<compile_context>
chip_gen: v7x
topology: tpu7x:2x2x1
jax: 0.10.0
libtpu: 0.0.40
codegen_flags: <defaults>
</compile_context>

<pallas_src>
import functools
import math

import numpy as np
import jax
import jax.numpy as jnp
from jax.experimental import pallas as pl
from jax.experimental.pallas import tpu as pltpu

_HALF_PI = float(np.pi / 2.0)


def _penc_kernel(scale_ref, bias_ref, o_ref, *, rows_per_block: int):
    """Writes one (Bblk, tr, L) output block of the positional encoding.

    scale_ref / bias_ref are (1, L) f32 per-lane constants with
        angle[row, lane] = global_row * scale[lane] + bias[lane]
    The (tr, L) tile is computed once and broadcast over the batch-block dim.
    Rows past R in a partial last tile produce finite garbage that Pallas masks
    out on writeback.
    """
    # program_id only at the TOP LEVEL of the body (lowering/interpret safe).
    base = (pl.program_id(0) * rows_per_block).astype(jnp.float32)
    tile_shape = o_ref.shape[1:]                                   # (tr, L)
    row = jax.lax.broadcasted_iota(jnp.int32, tile_shape, 0).astype(jnp.float32)
    angle = (base + row) * scale_ref[...] + bias_ref[...]          # one FMA / elem
    tile = jnp.sin(angle).astype(o_ref.dtype)                      # one EUP op / elem
    o_ref[...] = jnp.broadcast_to(tile[None, :, :], o_ref.shape)   # batch fan-out


def _choose_m(x: int, ch: int) -> int:
    """Pick m (a divisor of x) so each output row is L = ch*m lanes wide.

    Prefers the smallest m with L % 128 == 0 (unmasked full-lane stores, max row
    count for tiling); otherwise maximizes lane utilization of the padded store
    row while keeping at least 8 rows when possible.
    """
    if x <= 0 or ch % 128 == 0:
        return 1
    divs = sorted({d for i in range(1, int(math.isqrt(x)) + 1) if x % i == 0
                   for d in (i, x // i)})
    dense = [m for m in divs if (ch * m) % 128 == 0]
    if dense:
        return dense[0]

    def lane_util(m):
        L = ch * m
        return L / float(pl.cdiv(L, 128) * 128)

    good = [m for m in divs if x // m >= 8] or divs
    return max(good, key=lambda m: (lane_util(m), -m))


def positional_encoding_1d(tensor: jax.Array, *, max_block_bytes: int = 2 << 20) -> jax.Array:
    """Pallas equivalent of PositionalEncoding1D.forward.

    tensor: (batch, x, ch) — only its shape and dtype are used.
    returns: (batch, x, ch) positional encoding, same dtype as `tensor`.
    max_block_bytes: target output-block size per grid step; ~2 MiB suits
    v5e/v6e, 4 MiB amortizes per-step overhead better on v7x.
    """
    if tensor.ndim != 3:
        raise RuntimeError("The input tensor has to be 3d!")
    batch, x, orig_ch = (int(d) for d in tensor.shape)
    ch_pad = -(-orig_ch // 2) * 2                      # ceil(ch / 2) * 2
    out_dtype = tensor.dtype
    itemsize = jnp.dtype(out_dtype).itemsize

    # ---- lane-dense 2-D view: each batch plane emitted as (R, L), L = ch*m ----
    m = _choose_m(x, orig_ch)
    L = orig_ch * m
    R = x // m

    # ---- per-lane constants (single FMA in the kernel) -------------------------
    lane = np.arange(L)
    col = lane % orig_ch                               # original channel index
    inv_freq = 1.0 / (10000.0 ** (np.arange(0, ch_pad, 2, dtype=np.float64) / ch_pad))
    invf_lane = inv_freq[col // 2]
    # position p = row*m + lane//ch ; angle = p*inv_freq + (col%2)*pi/2 = row*scale + bias
    scale_row = jnp.asarray((m * invf_lane).astype(np.float32).reshape(1, L))
    bias_row = jnp.asarray(((lane // orig_ch) * invf_lane
                            + (col % 2) * _HALF_PI).astype(np.float32).reshape(1, L))

    # ---- tiling ----------------------------------------------------------------
    sub = max(8, 32 // max(1, itemsize))               # 8 f32 / 16 bf16 / 32 int8 sublanes
    row_bytes = L * itemsize
    # Batch block: whole batch unless even a minimum-height block would be huge.
    bblk_cap = max(max_block_bytes, 4 << 20)
    bblk = min(batch, max(1, bblk_cap // max(1, sub * row_bytes)))
    # Rows per block from the byte budget, rounded to the sublane multiple.
    rows_fit = max(1, max_block_bytes // max(1, bblk * row_bytes))
    tr = max(sub, (rows_fit // sub) * sub)
    # Keep >= 2 row tiles when R permits so the parallel axis splits across both
    # v7x TensorCores.
    if R >= 2 * sub:
        tr = min(tr, pl.cdiv(pl.cdiv(R, 2), sub) * sub)
    tr = min(tr, R)
    num_tiles = pl.cdiv(R, tr)
    num_bblk = pl.cdiv(batch, bblk)

    # ---- explicit VMEM budget: 2x double-buffered output + f32 temporaries -----
    out_block_bytes = bblk * tr * L * itemsize
    tmp_bytes = 3 * tr * L * 4                         # iota / angle / sin f32 temps
    need = 2 * out_block_bytes + tmp_bytes + 4 * L * 4 + (2 << 20)
    vmem_limit = int(min(max(need, 16 << 20), 32 << 20))

    const_spec = pl.BlockSpec((1, L), lambda i, b: (0, 0))
    out2d = pl.pallas_call(
        functools.partial(_penc_kernel, rows_per_block=tr),
        out_shape=jax.ShapeDtypeStruct((batch, R, L), out_dtype),
        grid=(num_tiles, num_bblk),
        in_specs=[const_spec, const_spec],
        out_specs=pl.BlockSpec((bblk, tr, L), lambda i, b: (b, i, 0)),
        compiler_params=pltpu.CompilerParams(
            dimension_semantics=("parallel", "parallel"),
            vmem_limit_bytes=vmem_limit),
    )(scale_row, bias_row)

    # Collapsing / expanding trailing contiguous dims is a free reshape.
    return out2d.reshape(batch, x, orig_ch)


def _reference(tensor: jax.Array) -> jax.Array:
    """Plain-JAX reference mirroring the PyTorch code."""
    batch, x, orig_ch = tensor.shape
    channels = int(np.ceil(orig_ch / 2) * 2)
    inv_freq = 1.0 / (10000.0 ** (jnp.arange(0, channels, 2, dtype=jnp.float32) / channels))
    pos_x = jnp.arange(x, dtype=jnp.float32)
    sin_inp = jnp.einsum("i,j->ij", pos_x, inv_freq)
    emb = jnp.stack((jnp.sin(sin_inp), jnp.cos(sin_inp)), axis=-1).reshape(x, channels)
    emb = emb[:, :orig_ch].astype(tensor.dtype)
    return jnp.broadcast_to(emb[None, :, :], (batch, x, orig_ch))


if __name__ == "__main__":
    key = jax.random.PRNGKey(0)

    # Primary example: (batch, x, ch) = (2, 16, 32), f32 -> lane-dense (R, L) = (4, 128).
    tensor = jax.random.normal(key, (2, 16, 32), dtype=jnp.float32)
    out = jax.block_until_ready(positional_encoding_1d(tensor))
    ref = _reference(tensor)
    assert out.shape == tensor.shape
    assert out.dtype == tensor.dtype
    assert jnp.allclose(out, ref, atol=1e-5, rtol=1e-5), "mismatch (2,16,32) f32"

    # Multi-tile path: tiny block budget -> 2 row tiles with a masked partial last tile.
    t2 = jnp.zeros((2, 40, 32), dtype=jnp.float32)
    out2 = jax.block_until_ready(positional_encoding_1d(t2, max_block_bytes=2048))
    assert jnp.allclose(out2, _reference(t2), atol=1e-4, rtol=1e-4), "mismatch (2,40,32) f32"

    # Odd channel count (cos-channel truncation), narrow-lane fallback layout, bf16 cast.
    t3 = jnp.zeros((3, 12, 5), dtype=jnp.bfloat16)
    out3 = jax.block_until_ready(positional_encoding_1d(t3))
    assert jnp.allclose(out3.astype(jnp.float32), _reference(t3).astype(jnp.float32),
                        atol=2e-2, rtol=2e-2), "mismatch (3,12,5) bf16"

    print("KERNEL_OK")
</pallas_src>

<mosaic_0001>
module attributes {stable_mosaic.version = 11 : i64} {
  func.func @_penc_kernel(%arg0: i32, %arg1: i32, %arg2: memref<1x128xf32, #tpu.memory_space<vmem>>, %arg3: memref<1x128xf32, #tpu.memory_space<vmem>>, %arg4: memref<2x4x128xf32, #tpu.memory_space<vmem>>) attributes {dimension_semantics = [#tpu.dimension_semantics<parallel>, #tpu.dimension_semantics<parallel>], iteration_bounds = array<i64: 1, 1>, scalar_prefetch = 0 : i64, scratch_operands = 0 : i64, tpu.core_type = #tpu.core_type<tc>, window_params = [{pipeline_mode = #tpu.pipeline_mode<synchronous>, transform_indices = @transform_0, window_bounds = array<i64: 1, 128>}, {pipeline_mode = #tpu.pipeline_mode<synchronous>, transform_indices = @transform_1, window_bounds = array<i64: 1, 128>}, {transform_indices = @transform_2, window_bounds = array<i64: 2, 4, 128>}]} {
    %c4_i32 = arith.constant 4 : i32
    %0 = arith.muli %arg0, %c4_i32 : i32
    %1 = arith.sitofp %0 : i32 to f32
    %2 = tpu.iota {dimensions = array<i32: 0>} : vector<4x128xi32>
    %3 = arith.sitofp %2 : vector<4x128xi32> to vector<4x128xf32>
    %4 = vector.broadcast %1 : f32 to vector<4x128xf32>
    %5 = arith.addf %4, %3 : vector<4x128xf32>
    %c0 = arith.constant 0 : index
    %c0_0 = arith.constant 0 : index
    %6 = vector.load %arg2[%c0, %c0_0] : memref<1x128xf32, #tpu.memory_space<vmem>>, vector<1x128xf32>
    %7 = vector.broadcast %6 : vector<1x128xf32> to vector<4x128xf32>
    %8 = arith.mulf %5, %7 : vector<4x128xf32>
    %c0_1 = arith.constant 0 : index
    %c0_2 = arith.constant 0 : index
    %9 = vector.load %arg3[%c0_1, %c0_2] : memref<1x128xf32, #tpu.memory_space<vmem>>, vector<1x128xf32>
    %10 = vector.broadcast %9 : vector<1x128xf32> to vector<4x128xf32>
    %11 = arith.addf %8, %10 : vector<4x128xf32>
    %12 = math.sin %11 : vector<4x128xf32>
    %13 = vector.shape_cast %12 : vector<4x128xf32> to vector<1x4x128xf32>
    %14 = vector.shape_cast %13 : vector<1x4x128xf32> to vector<1x4x128xf32>
    %15 = vector.broadcast %14 : vector<1x4x128xf32> to vector<2x4x128xf32>
    %c0_3 = arith.constant 0 : index
    %c0_4 = arith.constant 0 : index
    %c0_5 = arith.constant 0 : index
    %16 = vector.load %arg4[%c0_3, %c0_4, %c0_5] : memref<2x4x128xf32, #tpu.memory_space<vmem>>, vector<2x4x128xf32>
    tpu.vector_store %arg4[%c0_3, %c0_4, %c0_5], %15 {strides = array<i32>} : memref<2x4x128xf32, #tpu.memory_space<vmem>>, vector<2x4x128xf32>,
    return
  }
  func.func @transform_0(%arg0: i32, %arg1: i32) -> (i32, i32) {
    %c0_i32 = arith.constant 0 : i32
    %c0_i32_0 = arith.constant 0 : i32
    %c0_i32_1 = arith.constant 0 : i32
    return %c0_i32, %c0_i32_0 : i32, i32
  }
  func.func @transform_1(%arg0: i32, %arg1: i32) -> (i32, i32) {
    %c0_i32 = arith.constant 0 : i32
    %c0_i32_0 = arith.constant 0 : i32
    %c0_i32_1 = arith.constant 0 : i32
    return %c0_i32, %c0_i32_0 : i32, i32
  }
  func.func @transform_2(%arg0: i32, %arg1: i32) -> (i32, i32, i32) {
    %c0_i32 = arith.constant 0 : i32
    %c0_i32_0 = arith.constant 0 : i32
    return %arg1, %arg0, %c0_i32 : i32, i32, i32
  }
}

</mosaic_0001>

<llo_original>
// kernel: tpu_custom_call.1
$region0: #{tpu_custom_call.1}
  #allocation0 [shape = 'u32[]', space=smem, size = 0x4, offset = 0x4, fixed_abs, tag = 'smem constant byte address 0x4 - core index']
  #allocation1 [shape = 'u32[144,128]{1,0:T(1,128)}', space=vmem, size = 0x12000, scoped, tag = 'internal scratch']
  %s0 = inlined_call_operand.hbm [shape: f32[1,128], index: 0, kind: input, shape index: {}]
  %s1 = inlined_call_operand.vmem [shape: f32[1,128], index: 1, kind: input, shape index: {}]
  %s2 = inlined_call_operand.hbm [shape: f32[2,4,128], index: 2, kind: output, shape index: {}]
  %s3 = sld [smem:[#allocation0]]
  $region22: #{tpu_custom_call.1} parent=0
    _
  %s5 = ssub.s32 1, %s3
  %s6 = scalar_select 0, %s5, %s3
  $region1: #{tpu_custom_call.1} parent=0
    #allocation2 [shape = 'u8[512]{0}', space=vmem, size = 0x400, scoped, tag = 'input window, operand 0, single buffered']
    #allocation3 [shape = 's32[1]{0}', space=sflag, size = 0x4, scoped, tag = 'scoped memory for tpu_custom_call.1']
    #allocation4 [shape = 's32[1]{0}', space=sflag, size = 0x4, scoped, tag = 'scoped memory for tpu_custom_call.1']
    #allocation5 [shape = 'u8[4096]{0}', space=vmem, size = 0x1000, scoped, tag = 'output window, operand 0, single buffered']
    %7 = vsyncpa [#allocation3], 0
    %8 = vsyncpa [#allocation4], 0
    // Predicated region
    $region2: #{tpu_custom_call.1} parent=1 // pred_check
      _
    $region3: #{tpu_custom_call.1} parent=1 // pred_check_branch
      %10 = sbr.rel (0) target = $region5
    $region4: #{tpu_custom_call.1} parent=1 // pred_region
      %s12 = ssub.s32 16, 16
      %13 = vsyncadd [#allocation3], %s12
      %s15 = sshll.u32 [#allocation2], 4
      %s16 = int_to_ptr.vmem [resolvable:$true] %s15
      %18 = dma.hbm_to_vmem [thread:$0]  %s0, 16, %s16, [#allocation3]
    $region5: #{tpu_custom_call.1} parent=1 // pred_fallthru
      _
    // Predicated region
    $region6: #{tpu_custom_call.1} parent=1 // pred_check
      _
    $region7: #{tpu_custom_call.1} parent=1 // pred_check_branch
      %20 = sbr.rel (0) target = $region9
    $region8: #{tpu_custom_call.1} parent=1 // pred_region
      _
    $region9: #{tpu_custom_call.1} parent=1 // pred_fallthru
      _
    // Predicated region
    $region10: #{tpu_custom_call.1} parent=1 // pred_check
      _
    $region11: #{tpu_custom_call.1} parent=1 // pred_check_branch
      %22 = sbr.rel (0) target = $region13
    $region12: #{tpu_custom_call.1} parent=1 // pred_region
      %23 = dma.done [#allocation3], 16
    $region13: #{tpu_custom_call.1} parent=1 // pred_fallthru
      _
    %s24 = smul.u32 0, 4
    %s25 = scvt.s32.f32 %s24
    %v26 = vlaneseq
    %v27 = vshrl.u32 %v26, 7
    %v28 = vcvt.s32.f32 %v27
    %v29 = vstv %s25
    %v30 = vadd.f32 %v29, %v28
    %v31 = vld [vmem:[#allocation2] sm:$0x1]
    %v33 = vlaneseq
    %v34 = vshrl.u32 %v33, 7
    %v35 = vsub.s32 0, %v34
    %v36 = vrot.slane %v31, %v35
    %v38 = vmul.f32 %v30, %v36
    %v39 = vld [vmem:[%s1] sm:$0x1]
    %v41 = vlaneseq
    %v42 = vshrl.u32 %v41, 7
    %v43 = vsub.s32 0, %v42
    %v44 = vrot.slane %v39, %v43
    %v46 = vadd.f32 %v38, %v44
    %v47 = vand.u32 2147483647, %v46
    %vm48 = vcmp.le.f32.partialorder %v47, 0.7853982
    %vm49 = vcmp.lt.s32.totalorder %v46, 0
    %v50 = vand.u32 %v46, 2139095040
    %v51 = vshrl.u32 %v50, 23
    %v52 = vsub.s32 %v51, 127
    %v53 = vand.u32 2147483647, %v46
    %v54 = vand.u32 %v53, 8388607
    %v55 = vor.u32 %v54, 8388608
    %v56 = vsub.s32 0, %v55
    %v57 = vadd.s32 %v52, 1
    %vm58 = vcmp.gt.s32.totalorder %v57, 0
    %v59 = vsel %vm58, %v57, 0
    %v60 = vshrl.u32 %v59, 5
    %v61 = vand.u32 %v59, 31
    %v62 = vsub.s32 32, %v61
    %v63 = vshrl.u32 683565275, %v62
    %v64 = vshll.u32 683565275, %v61
    %v65 = vshrl.u32 2475754826, %v62
    %v66 = vor.u32 %v64, %v65
    %v67 = vshll.u32 2475754826, %v61
    %v68 = vshrl.u32 2131351028, %v62
    %v69 = vor.u32 %v67, %v68
    %v70 = vshll.u32 2131351028, %v61
    %v71 = vshrl.u32 2102212464, %v62
    %v72 = vor.u32 %v70, %v71
    %v73 = vshll.u32 2102212464, %v61
    %v74 = vshrl.u32 920167782, %v62
    %v75 = vor.u32 %v73, %v74
    %v76 = vshll.u32 920167782, %v61
    %v77 = vshrl.u32 1326507024, %v62
    %v78 = vor.u32 %v76, %v77
    %vm79 = vcmp.lt.s32.totalorder %v60, 1
    %vm80 = vcmp.lt.s32.totalorder %v60, 2
    %vm81 = vcmp.lt.s32.totalorder %v60, 3
    %vm82 = vcmp.lt.s32.totalorder %v60, 4
    %v83 = vsel %vm79, %v63, %v66
    %v84 = vsel %vm82, %v72, 2102212464
    %v85 = vsel %vm81, %v69, %v84
    %v86 = vsel %vm80, %v83, %v85
    %v87 = vsel %vm79, %v66, %v69
    %v88 = vsel %vm82, %v75, 920167782
    %v89 = vsel %vm81, %v72, %v88
    %v90 = vsel %vm80, %v87, %v89
    %v91 = vsel %vm79, %v69, %v72
    %v92 = vsel %vm82, %v78, 1326507024
    %v93 = vsel %vm81, %v75, %v92
    %v94 = vsel %vm80, %v91, %v93
    %v95 = vshll.u32 %v55, 8
    %v96 = vmul.u32.u64.compose %v95, %v94
    %v97 = vextract.low.u32 %v96
    %v98 = vextract.high.u32 %v96
    %v99 = vmul.u32.u64.compose %v95, %v90
    %v100 = vextract.low.u32 %v99
    %v101 = vextract.high.u32 %v99
    %v102 = vmul.u32 %v95, %v86
    %v103 = vadd.s32 %v98, %v100
    %vm104 = vc.u32 %v98, %v100
    %v105 = vadd.s32 %v101, 1
    %v106 = vsel %vm104, %v105, %v101
    %v107 = vadd.s32 %v102, %v106
    %v108 = vadd.s32 %v107, 536870912
    %v109 = vshrl.u32 %v108, 30
    %v110 = vshll.u32 %v109, 30
    %v111 = vsub.s32 %v107, %v110
    %vm112 = vcmp.lt.s32.totalorder %v111, 0
    %v113 = vsub.s32 0, %v111
    %v114 = vsel %vm112, %v113, %v111
    %v115 = vclz %v114
    %v116 = vsub.s32 %v115, 2
    %vm117 = vcmp.gt.s32.totalorder 0, %v116
    %v118 = vsel %vm117, 0, %v116
    %v119 = vsub.s32 32, %v118
    %v120 = vshll.u32 %v111, %v118
    %v121 = vshrl.u32 %v103, %v119
    %v122 = vor.u32 %v120, %v121
    %v123 = vsub.s32 4294967266, %v118
    %v124 = vadd.s32 %v123, 127
    %v125 = vshll.u32 %v124, 23
    %v126 = vor.u32 4788187, %v125
    %v127 = vand.u32 2147483647, %v126
    %v129 = vcvt.s32.f32 %v122
    %v130 = vmul.f32 %v129, %v127
    %v131 = vxor.u32 %v130, 2147483648
    %v132 = vsel %vm49, %v131, %v130
    %v133 = vsub.s32 4, %v109
    %v134 = vsel %vm49, %v133, %v109
    %v135 = vsel %vm48, %v46, %v132
    %v136 = vsel %vm48, 0, %v134
    %v137 = vcosq.f32.pop %v135
    %v138 = vsinq.f32.pop %v135
    %vm139 = vweird.f32 %v46
    %v140 = vadd.s32 %v136, 3
    %v141 = vand.u32 %v140, 3
    %vm142 = vcmp.lt.s32.totalorder %v141, 2
    %vm143 = vcmp.eq.s32.totalorder %v141, 0
    %v144 = vxor.u32 %v138, 2147483648
    %v145 = vsel %vm143, %v137, %v144
    %vm146 = vcmp.eq.s32.totalorder %v141, 2
    %v147 = vxor.u32 %v137, 2147483648
    %v148 = vsel %vm146, %v147, %v138
    %v149 = vsel %vm142, %v145, %v148
    %v150 = vsel %vm139, nan, %v149
    %151 = vst [vmem:[#allocation5] sm:$0xf] %v150
    %152 = vst [vmem:[#allocation5 + $0x4] sm:$0xf] %v150
    // Predicated region
    $region14: #{tpu_custom_call.1} parent=1 // pred_check
      _
    $region15: #{tpu_custom_call.1} parent=1 // pred_check_branch
      %154 = sbr.rel (0) target = $region17
    $region16: #{tpu_custom_call.1} parent=1 // pred_region
      %s156 = ssub.s32 128, 128
      %157 = vsyncadd [#allocation4], %s156
      %s158 = sshll.u32 [#allocation5], 4
      %s159 = int_to_ptr.vmem [resolvable:$true] %s158
      %164 = dma.vmem_to_hbm [thread:$0]  %s159, 128, %s2, [#allocation4], 64, 64, 4
    $region17: #{tpu_custom_call.1} parent=1 // pred_fallthru
      _
    // Predicated region
    $region18: #{tpu_custom_call.1} parent=1 // pred_check
      _
    $region19: #{tpu_custom_call.1} parent=1 // pred_check_branch
      %166 = sbr.rel (0) target = $region21
    $region20: #{tpu_custom_call.1} parent=1 // pred_region
      %167 = dma.done [#allocation4], 128
    $region21: #{tpu_custom_call.1} parent=1 // pred_fallthru
      _
    %168 = vsyncpa [#allocation3], 1
    %169 = vsyncpa [#allocation4], 1

</llo_original>
